<compile_context>
chip_gen: v7x
topology: tpu7x:2x2x1
jax: 0.10.0
libtpu: 0.0.40
codegen_flags: <defaults>
</compile_context>

<pallas_src>
import jax
import jax.numpy as jnp
from jax.experimental import pallas as pl
from jax.experimental.pallas import tpu as pltpu


def _fcnn_kernel(b_sref, x_ref, w_ref, o_ref):
    # b_sref: SMEM (1,) f32 | x_ref: (TM, H) | w_ref: (1, H) | o_ref: (1, 1, TM)
    # MXU reduction w . x^T -> lane-dense (1, TM); hides under the x-tile DMA.
    y = jax.lax.dot_general(
        w_ref[...], x_ref[...],
        dimension_numbers=(((1,), (1,)), ((), ())),   # contract H with H (q.k^T form)
        preferred_element_type=jnp.float32,
        precision=jax.lax.Precision.HIGHEST,
    )                                                 # (1, TM) f32
    y = y + b_sref[0].astype(jnp.float32)
    o_ref[...] = jnp.tanh(y)[None].astype(o_ref.dtype)   # (1, 1, TM) lane-dense store


def fcnn_forward(x, w, b, *, tm_cap=None):
    """x: (B, T, H), w: (H, 1), b: (1,). Returns (B, T, 1) = tanh(x @ w + b)."""
    B, T, H = x.shape
    out_dim = w.shape[1]
    assert out_dim == 1, "FCnn.forward is only shape-valid for out_dim == 1"

    M = B * T
    itemsize = jnp.dtype(x.dtype).itemsize
    row_bytes = H * itemsize

    # Generation-aware VMEM budget (v5e/v6e: 128 MiB, v7x: 64 MiB physical).
    try:
        vmem_cap = int(getattr(pltpu.get_tpu_info(), "vmem_capacity_bytes",
                               64 * 1024 * 1024))
    except Exception:
        vmem_cap = 64 * 1024 * 1024                      # conservative (v7x) fallback

    # Tile sized by bytes: ~4 MiB tiles reach 85%+ of the HBM roofline; the
    # double-buffered pair is clamped to a fraction of physical VMEM.
    target_tile_bytes = 4 * 1024 * 1024
    x_budget = min(48 * 1024 * 1024, (3 * vmem_cap) // 8)   # 24 MiB v7x / 48 MiB v6e,v5e
    tile_bytes = min(target_tile_bytes, x_budget // 2)
    tm = max(8, (tile_bytes // max(1, row_bytes)) // 8 * 8)
    m_ceil8 = max(8, ((M + 7) // 8) * 8)
    tm = min(tm, m_ceil8)
    if tm_cap is not None:                                # test hook: force small tiles
        tm = max(8, (min(tm, tm_cap) // 8) * 8)

    G = pl.cdiv(M, tm)
    # v7x megacore balance: prefer an even number of grid steps (best effort,
    # only ever shrinks tm so the VMEM budget still holds).
    if G > 1 and G % 2 == 1:
        tm_even = max(8, ((-(-M // (G + 1))) + 7) // 8 * 8)
        if pl.cdiv(M, tm_even) % 2 == 0:
            tm = tm_even
            G = pl.cdiv(M, tm)

    x2 = x.reshape(M, H)                       # ragged last block handled by Pallas
    w2 = w.reshape(1, H).astype(x.dtype)       # VMEM-resident weight row
    b1 = b.reshape(1).astype(jnp.float32)      # scalar-prefetched bias (SMEM)

    out3 = pl.pallas_call(
        _fcnn_kernel,
        out_shape=jax.ShapeDtypeStruct((G, 1, tm), x.dtype),
        grid_spec=pltpu.PrefetchScalarGridSpec(
            num_scalar_prefetch=1,
            grid=(G,),
            in_specs=[
                pl.BlockSpec((tm, H), lambda i, b_s: (i, 0)),   # streamed x tile
                pl.BlockSpec((1, H), lambda i, b_s: (0, 0)),    # resident weights
            ],
            out_specs=pl.BlockSpec((1, 1, tm), lambda i, b_s: (i, 0, 0)),
        ),
        compiler_params=pltpu.CompilerParams(
            dimension_semantics=("parallel",),
            vmem_limit_bytes=int(min((3 * vmem_cap) // 4, 96 * 1024 * 1024)),
        ),
        cost_estimate=pl.CostEstimate(
            flops=2 * M * H,
            transcendentals=M,
            bytes_accessed=(M * H + H + M) * itemsize,
        ),
    )(b1, x2, w2)

    return out3.reshape(G * tm)[:M].reshape(B, T, 1)


if __name__ == "__main__":
    # Small shapes consistent with the module's forward (out_dim must be 1).
    B, T, H, OUT = 2, 8, 32, 1

    key = jax.random.PRNGKey(0)
    kx, kw, kb = jax.random.split(key, 3)

    x = jax.random.normal(kx, (B, T, H), dtype=jnp.float32)
    # Mimic nn.Linear's uniform(-1/sqrt(H), 1/sqrt(H)) init.
    bound = 1.0 / (H ** 0.5)
    w = jax.random.uniform(kw, (H, OUT), minval=-bound, maxval=bound,
                           dtype=jnp.float32)
    b = jax.random.uniform(kb, (OUT,), minval=-bound, maxval=bound,
                           dtype=jnp.float32)

    out = jax.block_until_ready(fcnn_forward(x, w, b))
    ref = jnp.tanh(jnp.einsum("bth,ho->bto", x, w,
                              precision=jax.lax.Precision.HIGHEST) + b)
    assert out.shape == (B, T, OUT)
    assert jnp.allclose(out, ref, atol=1e-5, rtol=1e-5), \
        float(jnp.max(jnp.abs(out - ref)))

    # Multi-tile + ragged-last-block path (M = 21, tm = 8, G = 3): no padding
    # copy of x; the garbage lanes of the last tile are sliced off.
    B2, T2 = 3, 7
    x_r = jax.random.normal(kx, (B2, T2, H), dtype=jnp.float32)
    out_r = jax.block_until_ready(fcnn_forward(x_r, w, b, tm_cap=8))
    ref_r = jnp.tanh(jnp.einsum("bth,ho->bto", x_r, w,
                                precision=jax.lax.Precision.HIGHEST) + b)
    assert out_r.shape == (B2, T2, OUT)
    assert jnp.allclose(out_r, ref_r, atol=1e-5, rtol=1e-5)

    print("KERNEL_OK")
</pallas_src>

<mosaic_0001>
module attributes {stable_mosaic.version = 11 : i64} {
  func.func @_fcnn_kernel(%arg0: i32, %arg1: memref<1xf32, #tpu.memory_space<smem>>, %arg2: memref<16x32xf32, #tpu.memory_space<vmem>>, %arg3: memref<1x32xf32, #tpu.memory_space<vmem>>, %arg4: memref<1x1x16xf32, #tpu.memory_space<vmem>>) attributes {dimension_semantics = [#tpu.dimension_semantics<parallel>], iteration_bounds = array<i64: 1>, scalar_prefetch = 1 : i64, scratch_operands = 0 : i64, tpu.core_type = #tpu.core_type<tc>, window_params = [{transform_indices = @transform_0, window_bounds = array<i64: 16, 32>}, {pipeline_mode = #tpu.pipeline_mode<synchronous>, transform_indices = @transform_1, window_bounds = array<i64: 1, 32>}, {transform_indices = @transform_2, window_bounds = array<i64: 1, 1, 16>}]} {
    %c0 = arith.constant 0 : index
    %c0_0 = arith.constant 0 : index
    %0 = vector.load %arg3[%c0, %c0_0] : memref<1x32xf32, #tpu.memory_space<vmem>>, vector<1x32xf32>
    %c0_1 = arith.constant 0 : index
    %c0_2 = arith.constant 0 : index
    %1 = vector.load %arg2[%c0_1, %c0_2] : memref<16x32xf32, #tpu.memory_space<vmem>>, vector<16x32xf32>
    %cst = arith.constant dense<0.000000e+00> : vector<1x16xf32>
    %2 = tpu.matmul %0, %1, %cst {dimension_numbers = #tpu.dot_dimension_numbers<[1], [1], [0], [0], [0, 0, 1, 0], [], []>, precision = #tpu.contract_precision<fp32>} : vector<1x32xf32>, vector<16x32xf32>, vector<1x16xf32> -> vector<1x16xf32>
    %c0_3 = arith.constant 0 : index
    %3 = memref.load %arg1[%c0_3] : memref<1xf32, #tpu.memory_space<smem>>
    %4 = vector.broadcast %3 : f32 to vector<1x16xf32>
    %5 = arith.addf %2, %4 : vector<1x16xf32>
    %6 = math.tanh %5 : vector<1x16xf32>
    %7 = vector.shape_cast %6 : vector<1x16xf32> to vector<1x1x16xf32>
    %c0_4 = arith.constant 0 : index
    %c0_5 = arith.constant 0 : index
    %c0_6 = arith.constant 0 : index
    %8 = vector.load %arg4[%c0_4, %c0_5, %c0_6] : memref<1x1x16xf32, #tpu.memory_space<vmem>>, vector<1x1x16xf32>
    tpu.vector_store %arg4[%c0_4, %c0_5, %c0_6], %7 {strides = array<i32>} : memref<1x1x16xf32, #tpu.memory_space<vmem>>, vector<1x1x16xf32>,
    return
  }
  func.func @transform_0(%arg0: i32, %arg1: memref<1xf32, #tpu.memory_space<smem>>) -> (i32, i32) {
    %c0_i32 = arith.constant 0 : i32
    %c0_i32_0 = arith.constant 0 : i32
    return %arg0, %c0_i32 : i32, i32
  }
  func.func @transform_1(%arg0: i32, %arg1: memref<1xf32, #tpu.memory_space<smem>>) -> (i32, i32) {
    %c0_i32 = arith.constant 0 : i32
    %c0_i32_0 = arith.constant 0 : i32
    %c0_i32_1 = arith.constant 0 : i32
    return %c0_i32, %c0_i32_0 : i32, i32
  }
  func.func @transform_2(%arg0: i32, %arg1: memref<1xf32, #tpu.memory_space<smem>>) -> (i32, i32, i32) {
    %c0_i32 = arith.constant 0 : i32
    %c0_i32_0 = arith.constant 0 : i32
    %c0_i32_1 = arith.constant 0 : i32
    return %arg0, %c0_i32, %c0_i32_0 : i32, i32, i32
  }
}

</mosaic_0001>

<llo_original>
// kernel: tpu_custom_call.1
$region0: #{tpu_custom_call.1}
  #allocation0 [shape = 'u32[]', space=smem, size = 0x4, offset = 0x4, fixed_abs, tag = 'smem constant byte address 0x4 - core index']
  #allocation1 [shape = 'u32[144,128]{1,0:T(1,128)}', space=vmem, size = 0x12000, scoped, tag = 'internal scratch']
  #allocation2 [shape = 's32[1]{0}', space=sflag, size = 0x4, scoped, tag = 'scoped memory for tpu_custom_call.1']
  #allocation3 [shape = 'f32[1]{0:T(128)S(6)}', space=smem, size = 0x200, scoped, tag = 'prefetched SMEM operand 0']
  %s0 = inlined_call_operand.<no memory space> [shape: f32[1], index: 0, kind: input, shape index: {}]
  %s1 = inlined_call_operand.hbm [shape: f32[16,32], index: 1, kind: input, shape index: {}]
  %s2 = inlined_call_operand.vmem [shape: f32[1,32], index: 2, kind: input, shape index: {}]
  %s3 = inlined_call_operand.hbm [shape: f32[1,1,16], index: 3, kind: output, shape index: {}]
  %s4 = sld [smem:[#allocation0]]
  $region22: #{tpu_custom_call.1} parent=0
    _
  %s6 = ssub.s32 1, %s4
  %s7 = scalar_select 0, %s6, %s4
  %8 = sst [smem:[#allocation3]] %s0
  $region1: #{tpu_custom_call.1} parent=0
    #allocation4 [shape = 'u8[8192]{0}', space=vmem, size = 0x2000, scoped, tag = 'input window, operand 1, single buffered']
    #allocation5 [shape = 's32[1]{0}', space=sflag, size = 0x4, scoped, tag = 'scoped memory for tpu_custom_call.1']
    #allocation6 [shape = 's32[1]{0}', space=sflag, size = 0x4, scoped, tag = 'scoped memory for tpu_custom_call.1']
    #allocation7 [shape = 'u8[512]{0}', space=vmem, size = 0x400, scoped, tag = 'output window, operand 0, single buffered']
    %9 = vsyncpa [#allocation5], 0
    %10 = vsyncpa [#allocation6], 0
    // Predicated region
    $region2: #{tpu_custom_call.1} parent=1 // pred_check
      _
    $region3: #{tpu_custom_call.1} parent=1 // pred_check_branch
      %12 = sbr.rel (0) target = $region5
    $region4: #{tpu_custom_call.1} parent=1 // pred_region
      %s14 = ssub.s32 256, 256
      %15 = vsyncadd [#allocation5], %s14
      %s16 = sshll.u32 [#allocation4], 4
      %s17 = int_to_ptr.vmem [resolvable:$true] %s16
      %22 = dma.hbm_to_vmem [thread:$0]  %s1, 256, %s17, [#allocation5], 128, 128, 8
    $region5: #{tpu_custom_call.1} parent=1 // pred_fallthru
      _
    // Predicated region
    $region6: #{tpu_custom_call.1} parent=1 // pred_check
      _
    $region7: #{tpu_custom_call.1} parent=1 // pred_check_branch
      %24 = sbr.rel (0) target = $region9
    $region8: #{tpu_custom_call.1} parent=1 // pred_region
      _
    $region9: #{tpu_custom_call.1} parent=1 // pred_fallthru
      _
    // Predicated region
    $region10: #{tpu_custom_call.1} parent=1 // pred_check
      _
    $region11: #{tpu_custom_call.1} parent=1 // pred_check_branch
      %26 = sbr.rel (0) target = $region13
    $region12: #{tpu_custom_call.1} parent=1 // pred_region
      %27 = dma.done [#allocation5], 256
    $region13: #{tpu_custom_call.1} parent=1 // pred_fallthru
      _
    %v28 = vld [vmem:[%s2] sm:$0x1]
    %v29 = vld [vmem:[#allocation4] sm:$0xff]
    %v30 = vld [vmem:[#allocation4 + $0x8] sm:$0xff]
    %s31 = sld [smem:[#allocation3]]
    %v32 = vstv %s31
    %vm33 = vcmask 261120
    %v35 = vsel %vm33, %v28, 0
    %v38 = vsel %vm33, %v29, 0
    %v41 = vsel %vm33, %v30, 0
    %43 = vmatprep.subr.mxu0 0.0
    %v44 = vand.u32 %v38, 4294901760
    %45 = vmatpush1.xpose.msra.mxu0 %v44
    %46 = vmatprep.subr.mxu0 0.0
    %v47 = vand.u32 %v41, 4294901760
    %48 = vmatpush1.xpose.msra.mxu0 %v47
    %49 = vmatprep.subr.mxu0 0.0
    %50 = vmatpush1.xpose.msra.mxu0 0.0
    %51 = vmatprep.subr.mxu0 0.0
    %52 = vmatpush1.xpose.msra.mxu0 0.0
    %53 = vmatprep.subr.mxu0 0.0
    %54 = vmatpush1.xpose.msra.mxu0 0.0
    %55 = vmatprep.subr.mxu0 0.0
    %56 = vmatpush1.xpose.msra.mxu0 0.0
    %57 = vmatprep.subr.mxu0 0.0
    %58 = vmatpush1.xpose.msra.mxu0 0.0
    %59 = vmatprep.subr.mxu0 0.0
    %60 = vmatpush1.xpose.msra.mxu0 0.0
    %61 = vmatprep.subr.mxu0 0.0
    %62 = vmatpush1.xpose.msra.mxu0 0.0
    %63 = vmatprep.subr.mxu0 0.0
    %64 = vmatpush1.xpose.msra.mxu0 0.0
    %65 = vmatprep.subr.mxu0 0.0
    %66 = vmatpush1.xpose.msra.mxu0 0.0
    %67 = vmatprep.subr.mxu0 0.0
    %68 = vmatpush1.xpose.msra.mxu0 0.0
    %69 = vmatprep.subr.mxu0 0.0
    %70 = vmatpush1.xpose.msra.mxu0 0.0
    %71 = vmatprep.subr.mxu0 0.0
    %72 = vmatpush1.xpose.msra.mxu0 0.0
    %73 = vmatprep.subr.mxu0 0.0
    %74 = vmatpush1.xpose.msra.mxu0 0.0
    %75 = vmatprep.subr.mxu0 0.0
    %76 = vmatpush1.xpose.msra.mxu0 0.0
    %77 = vmatprep.subr.mxu0 0.0
    %78 = vmatpush1.xpose.msra.mxu0 0.0
    %79 = vmatprep.subr.mxu0 0.0
    %80 = vmatpush1.xpose.msra.mxu0 0.0
    %81 = vmatprep.subr.mxu0 0.0
    %82 = vmatpush1.xpose.msra.mxu0 0.0
    %83 = vmatprep.subr.mxu0 0.0
    %84 = vmatpush1.xpose.msra.mxu0 0.0
    %85 = vmatprep.subr.mxu0 0.0
    %86 = vmatpush1.xpose.msra.mxu0 0.0
    %87 = vmatprep.subr.mxu0 0.0
    %88 = vmatpush1.xpose.msra.mxu0 0.0
    %89 = vmatprep.subr.mxu0 0.0
    %90 = vmatpush1.xpose.msra.mxu0 0.0
    %91 = vmatprep.subr.mxu0 0.0
    %92 = vmatpush1.xpose.msra.mxu0 0.0
    %93 = vmatprep.subr.mxu0 0.0
    %94 = vmatpush1.xpose.msra.mxu0 0.0
    %95 = vmatprep.subr.mxu0 0.0
    %96 = vmatpush1.xpose.msra.mxu0 0.0
    %97 = vmatprep.subr.mxu0 0.0
    %98 = vmatpush1.xpose.msra.mxu0 0.0
    %99 = vmatprep.subr.mxu0 0.0
    %100 = vmatpush1.xpose.msra.mxu0 0.0
    %101 = vmatprep.subr.mxu0 0.0
    %102 = vmatpush1.xpose.msra.mxu0 0.0
    %103 = vmatprep.subr.mxu0 0.0
    %104 = vmatpush1.xpose.msra.mxu0 0.0
    %105 = vmatprep.subr.mxu0 0.0
    %106 = vmatpush1.xpose.msra.mxu0 0.0
    %107 = vmatprep.subr.mxu0 0.0
    %108 = vmatpush1.xpose.msra.mxu0 0.0
    %109 = vmatprep.mubr.f32.mxu0 0.0
    %v110 = vand.u32 %v35, 4294901760
    %v111 = vsub.f32 %v35, %v110
    %v112 = vand.u32 %v111, 4294901760
    %v113 = vsub.f32 %v111, %v112
    %v114 = vand.u32 %v113, 4294901760
    %115 = vmatmul.mubr.f32.gmra.mrb[0].mxu0 %v114
    %v116 = vpop.f32.mrb[0].mxu0
    %v117 = vadd.f32 %v32, %v116
    %v118 = vpop.f32.mrb[0].mxu0
    %119 = vdwg.mxu0
    %120 = vmatprep.subr.mxu0 0.0
    %v121 = vand.u32 %v38, 4294901760
    %v122 = vsub.f32 %v38, %v121
    %v123 = vand.u32 %v122, 4294901760
    %v124 = vsub.f32 %v122, %v123
    %v125 = vand.u32 %v124, 4294901760
    %126 = vmatpush1.xpose.msra.mxu0 %v125
    %127 = vmatprep.subr.mxu0 0.0
    %v128 = vand.u32 %v41, 4294901760
    %v129 = vsub.f32 %v41, %v128
    %v130 = vand.u32 %v129, 4294901760
    %v131 = vsub.f32 %v129, %v130
    %v132 = vand.u32 %v131, 4294901760
    %133 = vmatpush1.xpose.msra.mxu0 %v132
    %134 = vmatprep.subr.mxu0 0.0
    %135 = vmatpush1.xpose.msra.mxu0 0.0
    %136 = vmatprep.subr.mxu0 0.0
    %137 = vmatpush1.xpose.msra.mxu0 0.0
    %138 = vmatprep.subr.mxu0 0.0
    %139 = vmatpush1.xpose.msra.mxu0 0.0
    %140 = vmatprep.subr.mxu0 0.0
    %141 = vmatpush1.xpose.msra.mxu0 0.0
    %142 = vmatprep.subr.mxu0 0.0
    %143 = vmatpush1.xpose.msra.mxu0 0.0
    %144 = vmatprep.subr.mxu0 0.0
    %145 = vmatpush1.xpose.msra.mxu0 0.0
    %146 = vmatprep.subr.mxu0 0.0
    %147 = vmatpush1.xpose.msra.mxu0 0.0
    %148 = vmatprep.subr.mxu0 0.0
    %149 = vmatpush1.xpose.msra.mxu0 0.0
    %150 = vmatprep.subr.mxu0 0.0
    %151 = vmatpush1.xpose.msra.mxu0 0.0
    %152 = vmatprep.subr.mxu0 0.0
    %153 = vmatpush1.xpose.msra.mxu0 0.0
    %154 = vmatprep.subr.mxu0 0.0
    %155 = vmatpush1.xpose.msra.mxu0 0.0
    %156 = vmatprep.subr.mxu0 0.0
    %157 = vmatpush1.xpose.msra.mxu0 0.0
    %158 = vmatprep.subr.mxu0 0.0
    %159 = vmatpush1.xpose.msra.mxu0 0.0
    %160 = vmatprep.subr.mxu0 0.0
    %161 = vmatpush1.xpose.msra.mxu0 0.0
    %162 = vmatprep.subr.mxu0 0.0
    %163 = vmatpush1.xpose.msra.mxu0 0.0
    %164 = vmatprep.subr.mxu0 0.0
    %165 = vmatpush1.xpose.msra.mxu0 0.0
    %166 = vmatprep.subr.mxu0 0.0
    %167 = vmatpush1.xpose.msra.mxu0 0.0
    %168 = vmatprep.subr.mxu0 0.0
    %169 = vmatpush1.xpose.msra.mxu0 0.0
    %170 = vmatprep.subr.mxu0 0.0
    %171 = vmatpush1.xpose.msra.mxu0 0.0
    %172 = vmatprep.subr.mxu0 0.0
    %173 = vmatpush1.xpose.msra.mxu0 0.0
    %174 = vmatprep.subr.mxu0 0.0
    %175 = vmatpush1.xpose.msra.mxu0 0.0
    %176 = vmatprep.subr.mxu0 0.0
    %177 = vmatpush1.xpose.msra.mxu0 0.0
    %178 = vmatprep.subr.mxu0 0.0
    %179 = vmatpush1.xpose.msra.mxu0 0.0
    %180 = vmatprep.subr.mxu0 0.0
    %181 = vmatpush1.xpose.msra.mxu0 0.0
    %182 = vmatprep.subr.mxu0 0.0
    %183 = vmatpush1.xpose.msra.mxu0 0.0
    %184 = vmatprep.subr.mxu0 0.0
    %185 = vmatpush1.xpose.msra.mxu0 0.0
    %186 = vmatprep.subr.mxu0 0.0
    %187 = vmatpush1.xpose.msra.mxu0 0.0
    %188 = vmatprep.subr.mxu0 0.0
    %189 = vmatpush1.xpose.msra.mxu0 0.0
    %190 = vmatprep.subr.mxu0 0.0
    %191 = vmatpush1.xpose.msra.mxu0 0.0
    %192 = vmatprep.subr.mxu0 0.0
    %193 = vmatpush1.xpose.msra.mxu0 0.0
    %194 = vmatprep.mubr.f32.mxu0 0.0
    %v195 = vand.u32 %v35, 4294901760
    %196 = vmatmul.mubr.f32.gmra.mrb[0].mxu0 %v195
    %v197 = vpop.f32.mrb[0].mxu0
    %v198 = vadd.f32 %v117, %v197
    %v199 = vpop.f32.mrb[0].mxu0
    %200 = vdwg.mxu0
    %201 = vmatprep.subr.mxu0 0.0
    %v202 = vand.u32 %v38, 4294901760
    %v203 = vsub.f32 %v38, %v202
    %204 = vmatpush1.xpose.msra.mxu0 %v203
    %205 = vmatprep.subr.mxu0 0.0
    %v206 = vand.u32 %v41, 4294901760
    %v207 = vsub.f32 %v41, %v206
    %208 = vmatpush1.xpose.msra.mxu0 %v207
    %209 = vmatprep.subr.mxu0 0.0
    %210 = vmatpush1.xpose.msra.mxu0 0.0
    %211 = vmatprep.subr.mxu0 0.0
    %212 = vmatpush1.xpose.msra.mxu0 0.0
    %213 = vmatprep.subr.mxu0 0.0
    %214 = vmatpush1.xpose.msra.mxu0 0.0
    %215 = vmatprep.subr.mxu0 0.0
    %216 = vmatpush1.xpose.msra.mxu0 0.0
    %217 = vmatprep.subr.mxu0 0.0
    %218 = vmatpush1.xpose.msra.mxu0 0.0
    %219 = vmatprep.subr.mxu0 0.0
    %220 = vmatpush1.xpose.msra.mxu0 0.0
    %221 = vmatprep.subr.mxu0 0.0
    %222 = vmatpush1.xpose.msra.mxu0 0.0
    %223 = vmatprep.subr.mxu0 0.0
    %224 = vmatpush1.xpose.msra.mxu0 0.0
    %225 = vmatprep.subr.mxu0 0.0
    %226 = vmatpush1.xpose.msra.mxu0 0.0
    %227 = vmatprep.subr.mxu0 0.0
    %228 = vmatpush1.xpose.msra.mxu0 0.0
    %229 = vmatprep.subr.mxu0 0.0
    %230 = vmatpush1.xpose.msra.mxu0 0.0
    %231 = vmatprep.subr.mxu0 0.0
    %232 = vmatpush1.xpose.msra.mxu0 0.0
    %233 = vmatprep.subr.mxu0 0.0
    %234 = vmatpush1.xpose.msra.mxu0 0.0
    %235 = vmatprep.subr.mxu0 0.0
    %236 = vmatpush1.xpose.msra.mxu0 0.0
    %237 = vmatprep.subr.mxu0 0.0
    %238 = vmatpush1.xpose.msra.mxu0 0.0
    %239 = vmatprep.subr.mxu0 0.0
    %240 = vmatpush1.xpose.msra.mxu0 0.0
    %241 = vmatprep.subr.mxu0 0.0
    %242 = vmatpush1.xpose.msra.mxu0 0.0
    %243 = vmatprep.subr.mxu0 0.0
    %244 = vmatpush1.xpose.msra.mxu0 0.0
    %245 = vmatprep.subr.mxu0 0.0
    %246 = vmatpush1.xpose.msra.mxu0 0.0
    %247 = vmatprep.subr.mxu0 0.0
    %248 = vmatpush1.xpose.msra.mxu0 0.0
    %249 = vmatprep.subr.mxu0 0.0
    %250 = vmatpush1.xpose.msra.mxu0 0.0
    %251 = vmatprep.subr.mxu0 0.0
    %252 = vmatpush1.xpose.msra.mxu0 0.0
    %253 = vmatprep.subr.mxu0 0.0
    %254 = vmatpush1.xpose.msra.mxu0 0.0
    %255 = vmatprep.subr.mxu0 0.0
    %256 = vmatpush1.xpose.msra.mxu0 0.0
    %257 = vmatprep.subr.mxu0 0.0
    %258 = vmatpush1.xpose.msra.mxu0 0.0
    %259 = vmatprep.subr.mxu0 0.0
    %260 = vmatpush1.xpose.msra.mxu0 0.0
    %261 = vmatprep.subr.mxu0 0.0
    %262 = vmatpush1.xpose.msra.mxu0 0.0
    %263 = vmatprep.subr.mxu0 0.0
    %264 = vmatpush1.xpose.msra.mxu0 0.0
    %265 = vmatprep.subr.mxu0 0.0
    %266 = vmatpush1.xpose.msra.mxu0 0.0
    %267 = vmatprep.subr.mxu0 0.0
    %268 = vmatpush1.xpose.msra.mxu0 0.0
    %269 = vmatprep.mubr.f32.mxu0 0.0
    %v270 = vand.u32 %v35, 4294901760
    %v271 = vsub.f32 %v35, %v270
    %272 = vmatmul.mubr.f32.gmra.mrb[0].mxu0 %v271
    %v273 = vpop.f32.mrb[0].mxu0
    %v274 = vadd.f32 %v198, %v273
    %v275 = vpop.f32.mrb[0].mxu0
    %276 = vdwg.mxu0
    %277 = vmatprep.subr.mxu0 0.0
    %v278 = vand.u32 %v38, 4294901760
    %279 = vmatpush1.xpose.msra.mxu0 %v278
    %280 = vmatprep.subr.mxu0 0.0
    %v281 = vand.u32 %v41, 4294901760
    %282 = vmatpush1.xpose.msra.mxu0 %v281
    %283 = vmatprep.subr.mxu0 0.0
    %284 = vmatpush1.xpose.msra.mxu0 0.0
    %285 = vmatprep.subr.mxu0 0.0
    %286 = vmatpush1.xpose.msra.mxu0 0.0
    %287 = vmatprep.subr.mxu0 0.0
    %288 = vmatpush1.xpose.msra.mxu0 0.0
    %289 = vmatprep.subr.mxu0 0.0
    %290 = vmatpush1.xpose.msra.mxu0 0.0
    %291 = vmatprep.subr.mxu0 0.0
    %292 = vmatpush1.xpose.msra.mxu0 0.0
    %293 = vmatprep.subr.mxu0 0.0
    %294 = vmatpush1.xpose.msra.mxu0 0.0
    %295 = vmatprep.subr.mxu0 0.0
    %296 = vmatpush1.xpose.msra.mxu0 0.0
    %297 = vmatprep.subr.mxu0 0.0
    %298 = vmatpush1.xpose.msra.mxu0 0.0
    %299 = vmatprep.subr.mxu0 0.0
    %300 = vmatpush1.xpose.msra.mxu0 0.0
    %301 = vmatprep.subr.mxu0 0.0
    %302 = vmatpush1.xpose.msra.mxu0 0.0
    %303 = vmatprep.subr.mxu0 0.0
    %304 = vmatpush1.xpose.msra.mxu0 0.0
    %305 = vmatprep.subr.mxu0 0.0
    %306 = vmatpush1.xpose.msra.mxu0 0.0
    %307 = vmatprep.subr.mxu0 0.0
    %308 = vmatpush1.xpose.msra.mxu0 0.0
    %309 = vmatprep.subr.mxu0 0.0
    %310 = vmatpush1.xpose.msra.mxu0 0.0
    %311 = vmatprep.subr.mxu0 0.0
    %312 = vmatpush1.xpose.msra.mxu0 0.0
    %313 = vmatprep.subr.mxu0 0.0
    %314 = vmatpush1.xpose.msra.mxu0 0.0
    %315 = vmatprep.subr.mxu0 0.0
    %316 = vmatpush1.xpose.msra.mxu0 0.0
    %317 = vmatprep.subr.mxu0 0.0
    %318 = vmatpush1.xpose.msra.mxu0 0.0
    %319 = vmatprep.subr.mxu0 0.0
    %320 = vmatpush1.xpose.msra.mxu0 0.0
    %321 = vmatprep.subr.mxu0 0.0
    %322 = vmatpush1.xpose.msra.mxu0 0.0
    %323 = vmatprep.subr.mxu0 0.0
    %324 = vmatpush1.xpose.msra.mxu0 0.0
    %325 = vmatprep.subr.mxu0 0.0
    %326 = vmatpush1.xpose.msra.mxu0 0.0
    %327 = vmatprep.subr.mxu0 0.0
    %328 = vmatpush1.xpose.msra.mxu0 0.0
    %329 = vmatprep.subr.mxu0 0.0
    %330 = vmatpush1.xpose.msra.mxu0 0.0
    %331 = vmatprep.subr.mxu0 0.0
    %332 = vmatpush1.xpose.msra.mxu0 0.0
    %333 = vmatprep.subr.mxu0 0.0
    %334 = vmatpush1.xpose.msra.mxu0 0.0
    %335 = vmatprep.subr.mxu0 0.0
    %336 = vmatpush1.xpose.msra.mxu0 0.0
    %337 = vmatprep.subr.mxu0 0.0
    %338 = vmatpush1.xpose.msra.mxu0 0.0
    %339 = vmatprep.subr.mxu0 0.0
    %340 = vmatpush1.xpose.msra.mxu0 0.0
    %341 = vmatprep.subr.mxu0 0.0
    %342 = vmatpush1.xpose.msra.mxu0 0.0
    %343 = vmatprep.mubr.f32.mxu0 0.0
    %v344 = vand.u32 %v35, 4294901760
    %v345 = vsub.f32 %v35, %v344
    %v346 = vand.u32 %v345, 4294901760
    %347 = vmatmul.mubr.f32.gmra.mrb[0].mxu0 %v346
    %v348 = vpop.f32.mrb[0].mxu0
    %v349 = vadd.f32 %v274, %v348
    %v350 = vpop.f32.mrb[0].mxu0
    %351 = vdwg.mxu0
    %352 = vmatprep.subr.mxu0 0.0
    %v353 = vand.u32 %v38, 4294901760
    %v354 = vsub.f32 %v38, %v353
    %v355 = vand.u32 %v354, 4294901760
    %356 = vmatpush1.xpose.msra.mxu0 %v355
    %357 = vmatprep.subr.mxu0 0.0
    %v358 = vand.u32 %v41, 4294901760
    %v359 = vsub.f32 %v41, %v358
    %v360 = vand.u32 %v359, 4294901760
    %361 = vmatpush1.xpose.msra.mxu0 %v360
    %362 = vmatprep.subr.mxu0 0.0
    %363 = vmatpush1.xpose.msra.mxu0 0.0
    %364 = vmatprep.subr.mxu0 0.0
    %365 = vmatpush1.xpose.msra.mxu0 0.0
    %366 = vmatprep.subr.mxu0 0.0
    %367 = vmatpush1.xpose.msra.mxu0 0.0
    %368 = vmatprep.subr.mxu0 0.0
    %369 = vmatpush1.xpose.msra.mxu0 0.0
    %370 = vmatprep.subr.mxu0 0.0
    %371 = vmatpush1.xpose.msra.mxu0 0.0
    %372 = vmatprep.subr.mxu0 0.0
    %373 = vmatpush1.xpose.msra.mxu0 0.0
    %374 = vmatprep.subr.mxu0 0.0
    %375 = vmatpush1.xpose.msra.mxu0 0.0
    %376 = vmatprep.subr.mxu0 0.0
    %377 = vmatpush1.xpose.msra.mxu0 0.0
    %378 = vmatprep.subr.mxu0 0.0
    %379 = vmatpush1.xpose.msra.mxu0 0.0
    %380 = vmatprep.subr.mxu0 0.0
    %381 = vmatpush1.xpose.msra.mxu0 0.0
    %382 = vmatprep.subr.mxu0 0.0
    %383 = vmatpush1.xpose.msra.mxu0 0.0
    %384 = vmatprep.subr.mxu0 0.0
    %385 = vmatpush1.xpose.msra.mxu0 0.0
    %386 = vmatprep.subr.mxu0 0.0
    %387 = vmatpush1.xpose.msra.mxu0 0.0
    %388 = vmatprep.subr.mxu0 0.0
    %389 = vmatpush1.xpose.msra.mxu0 0.0
    %390 = vmatprep.subr.mxu0 0.0
    %391 = vmatpush1.xpose.msra.mxu0 0.0
    %392 = vmatprep.subr.mxu0 0.0
    %393 = vmatpush1.xpose.msra.mxu0 0.0
    %394 = vmatprep.subr.mxu0 0.0
    %395 = vmatpush1.xpose.msra.mxu0 0.0
    %396 = vmatprep.subr.mxu0 0.0
    %397 = vmatpush1.xpose.msra.mxu0 0.0
    %398 = vmatprep.subr.mxu0 0.0
    %399 = vmatpush1.xpose.msra.mxu0 0.0
    %400 = vmatprep.subr.mxu0 0.0
    %401 = vmatpush1.xpose.msra.mxu0 0.0
    %402 = vmatprep.subr.mxu0 0.0
    %403 = vmatpush1.xpose.msra.mxu0 0.0
    %404 = vmatprep.subr.mxu0 0.0
    %405 = vmatpush1.xpose.msra.mxu0 0.0
    %406 = vmatprep.subr.mxu0 0.0
    %407 = vmatpush1.xpose.msra.mxu0 0.0
    %408 = vmatprep.subr.mxu0 0.0
    %409 = vmatpush1.xpose.msra.mxu0 0.0
    %410 = vmatprep.subr.mxu0 0.0
    %411 = vmatpush1.xpose.msra.mxu0 0.0
    %412 = vmatprep.subr.mxu0 0.0
    %413 = vmatpush1.xpose.msra.mxu0 0.0
    %414 = vmatprep.subr.mxu0 0.0
    %415 = vmatpush1.xpose.msra.mxu0 0.0
    %416 = vmatprep.subr.mxu0 0.0
    %417 = vmatpush1.xpose.msra.mxu0 0.0
    %418 = vmatprep.subr.mxu0 0.0
    %419 = vmatpush1.xpose.msra.mxu0 0.0
    %420 = vmatprep.subr.mxu0 0.0
    %421 = vmatpush1.xpose.msra.mxu0 0.0
    %422 = vmatprep.mubr.f32.mxu0 0.0
    %v423 = vand.u32 %v35, 4294901760
    %424 = vmatmul.mubr.f32.gmra.mrb[0].mxu0 %v423
    %v425 = vpop.f32.mrb[0].mxu0
    %v426 = vadd.f32 %v349, %v425
    %v427 = vpop.f32.mrb[0].mxu0
    %428 = vdwg.mxu0
    %429 = vmatprep.subr.mxu0 0.0
    %v430 = vand.u32 %v38, 4294901760
    %431 = vmatpush1.xpose.msra.mxu0 %v430
    %432 = vmatprep.subr.mxu0 0.0
    %v433 = vand.u32 %v41, 4294901760
    %434 = vmatpush1.xpose.msra.mxu0 %v433
    %435 = vmatprep.subr.mxu0 0.0
    %436 = vmatpush1.xpose.msra.mxu0 0.0
    %437 = vmatprep.subr.mxu0 0.0
    %438 = vmatpush1.xpose.msra.mxu0 0.0
    %439 = vmatprep.subr.mxu0 0.0
    %440 = vmatpush1.xpose.msra.mxu0 0.0
    %441 = vmatprep.subr.mxu0 0.0
    %442 = vmatpush1.xpose.msra.mxu0 0.0
    %443 = vmatprep.subr.mxu0 0.0
    %444 = vmatpush1.xpose.msra.mxu0 0.0
    %445 = vmatprep.subr.mxu0 0.0
    %446 = vmatpush1.xpose.msra.mxu0 0.0
    %447 = vmatprep.subr.mxu0 0.0
    %448 = vmatpush1.xpose.msra.mxu0 0.0
    %449 = vmatprep.subr.mxu0 0.0
    %450 = vmatpush1.xpose.msra.mxu0 0.0
    %451 = vmatprep.subr.mxu0 0.0
    %452 = vmatpush1.xpose.msra.mxu0 0.0
    %453 = vmatprep.subr.mxu0 0.0
    %454 = vmatpush1.xpose.msra.mxu0 0.0
    %455 = vmatprep.subr.mxu0 0.0
    %456 = vmatpush1.xpose.msra.mxu0 0.0
    %457 = vmatprep.subr.mxu0 0.0
    %458 = vmatpush1.xpose.msra.mxu0 0.0
    %459 = vmatprep.subr.mxu0 0.0
    %460 = vmatpush1.xpose.msra.mxu0 0.0
    %461 = vmatprep.subr.mxu0 0.0
    %462 = vmatpush1.xpose.msra.mxu0 0.0
    %463 = vmatprep.subr.mxu0 0.0
    %464 = vmatpush1.xpose.msra.mxu0 0.0
    %465 = vmatprep.subr.mxu0 0.0
    %466 = vmatpush1.xpose.msra.mxu0 0.0
    %467 = vmatprep.subr.mxu0 0.0
    %468 = vmatpush1.xpose.msra.mxu0 0.0
    %469 = vmatprep.subr.mxu0 0.0
    %470 = vmatpush1.xpose.msra.mxu0 0.0
    %471 = vmatprep.subr.mxu0 0.0
    %472 = vmatpush1.xpose.msra.mxu0 0.0
    %473 = vmatprep.subr.mxu0 0.0
    %474 = vmatpush1.xpose.msra.mxu0 0.0
    %475 = vmatprep.subr.mxu0 0.0
    %476 = vmatpush1.xpose.msra.mxu0 0.0
    %477 = vmatprep.subr.mxu0 0.0
    %478 = vmatpush1.xpose.msra.mxu0 0.0
    %479 = vmatprep.subr.mxu0 0.0
    %480 = vmatpush1.xpose.msra.mxu0 0.0
    %481 = vmatprep.subr.mxu0 0.0
    %482 = vmatpush1.xpose.msra.mxu0 0.0
    %483 = vmatprep.subr.mxu0 0.0
    %484 = vmatpush1.xpose.msra.mxu0 0.0
    %485 = vmatprep.subr.mxu0 0.0
    %486 = vmatpush1.xpose.msra.mxu0 0.0
    %487 = vmatprep.subr.mxu0 0.0
    %488 = vmatpush1.xpose.msra.mxu0 0.0
    %489 = vmatprep.subr.mxu0 0.0
    %490 = vmatpush1.xpose.msra.mxu0 0.0
    %491 = vmatprep.subr.mxu0 0.0
    %492 = vmatpush1.xpose.msra.mxu0 0.0
    %493 = vmatprep.subr.mxu0 0.0
    %494 = vmatpush1.xpose.msra.mxu0 0.0
    %495 = vmatprep.mubr.f32.mxu0 0.0
    %v496 = vand.u32 %v35, 4294901760
    %497 = vmatmul.mubr.f32.gmra.mrb[0].mxu0 %v496
    %v498 = vpop.f32.mrb[0].mxu0
    %v499 = vadd.f32 %v426, %v498
    %v500 = vpop.f32.mrb[0].mxu0
    %501 = vdwg.mxu0
    %v502 = vtanh.pop %v499
    %vm503 = vcmask 122880
    %504 = vst.msk [vmem:[#allocation7] sm:$0x1] %vm503, %v502
    // Predicated region
    $region14: #{tpu_custom_call.1} parent=1 // pred_check
      _
    $region15: #{tpu_custom_call.1} parent=1 // pred_check_branch
      %506 = sbr.rel (0) target = $region17
    $region16: #{tpu_custom_call.1} parent=1 // pred_region
      %s508 = ssub.s32 16, 16
      %509 = vsyncadd [#allocation6], %s508
      %s511 = sshll.u32 [#allocation7], 4
      %s512 = int_to_ptr.vmem [resolvable:$true] %s511
      %514 = dma.vmem_to_hbm [thread:$0]  %s512, 16, %s3, [#allocation6]
    $region17: #{tpu_custom_call.1} parent=1 // pred_fallthru
      _
    // Predicated region
    $region18: #{tpu_custom_call.1} parent=1 // pred_check
      _
    $region19: #{tpu_custom_call.1} parent=1 // pred_check_branch
      %516 = sbr.rel (0) target = $region21
    $region20: #{tpu_custom_call.1} parent=1 // pred_region
      %517 = dma.done [#allocation6], 16
    $region21: #{tpu_custom_call.1} parent=1 // pred_fallthru
      _
    %518 = vsyncpa [#allocation5], 1
    %519 = vsyncpa [#allocation6], 1

</llo_original>
